<compile_context>
chip_gen: v6e
topology: v6e:2x2x1
jax: 0.10.0
libtpu: 0.0.40
codegen_flags: <defaults>
</compile_context>

<pallas_src>
import functools

import jax
import jax.numpy as jnp
from jax.experimental import pallas as pl
from jax.experimental.pallas import tpu as pltpu

_LANE = 128
_SUBLANE_BF16 = 16  # bf16 packs 2 rows per sublane -> align small tiles to 16


def _round_up(n, m):
    return ((n + m - 1) // m) * m


def _mlp_kernel(x_ref, w1_ref, w23_ref, b_ref, o_ref):
    # fc1 -> relu   (bf16 operands, f32 MXU accumulation, f32 bias add)
    h = jnp.dot(x_ref[...], w1_ref[...], preferred_element_type=jnp.float32)
    h = jnp.maximum(h + b_ref[0:1, :], 0.0).astype(jnp.bfloat16)
    # fc2 -> relu
    h = jnp.dot(h, w23_ref[0], preferred_element_type=jnp.float32)
    h = jnp.maximum(h + b_ref[1:2, :], 0.0).astype(jnp.bfloat16)
    # fc3 (no activation)
    h = jnp.dot(h, w23_ref[1], preferred_element_type=jnp.float32)
    o_ref[...] = (h + b_ref[2:3, :]).astype(o_ref.dtype)


def pack_params(w1, b1, w2, b2, w3, b3):
    """One-time packing: pad hidden/output dims to 128, cast weights to bf16.

    Call this ONCE (outside the per-step hot path) and reuse the results.
    Zero padding is mathematically inert (zero weight rows/cols and zero bias
    pads contribute nothing; relu(0) = 0).
    """
    state_dim, h1 = w1.shape
    h2 = w2.shape[1]
    action_dim = w3.shape[1]
    Dp = _round_up(max(h1, h2, action_dim), _LANE)

    def pad_to(a, shape):
        return jnp.pad(a, [(0, s - d) for s, d in zip(shape, a.shape)])

    w1_p = pad_to(w1, (state_dim, Dp)).astype(jnp.bfloat16)          # fc1 keeps true K
    w23_p = jnp.stack([pad_to(w2, (Dp, Dp)),
                       pad_to(w3, (Dp, Dp))]).astype(jnp.bfloat16)   # one resident slab
    b_p = jnp.stack([pad_to(b1.reshape(-1), (Dp,)),
                     pad_to(b2.reshape(-1), (Dp,)),
                     pad_to(b3.reshape(-1), (Dp,))]).astype(jnp.float32)
    dims = (state_dim, h1, h2, action_dim)
    return w1_p, w23_p, b_p, dims


def _batch_tile(B):
    """Batch tile: big enough to amortize grid-step overhead, >=2 tiles for v7x."""
    if B < _LANE:
        return _round_up(B, _SUBLANE_BF16)          # single tile, bf16-aligned
    Bp0 = _round_up(B, _LANE)
    if Bp0 < 2 * _LANE:
        return _LANE                                # 1-2 steps, nothing to split
    tb = min(512, (Bp0 // 2) // _LANE * _LANE)      # <=512 rows, keep >=2 tiles
    return max(tb, _LANE)


@functools.partial(jax.jit, static_argnames=("dims",))
def mlp_policy_forward(x, w1_p, w23_p, b_p, *, dims):
    state_dim, h1, h2, action_dim = dims
    B = x.shape[0]
    Dp = w1_p.shape[1]

    TB = _batch_tile(B)
    Bp = _round_up(B, TB)

    x_p = x.astype(jnp.bfloat16)                    # feature dim stays unpadded
    if Bp != B:
        x_p = jnp.pad(x_p, ((0, Bp - B), (0, 0)))

    grid = (Bp // TB,)

    # Advisory cost from the TRUE (unpadded) work.
    flops = 2 * B * (state_dim * h1 + h1 * h2 + h2 * action_dim)
    bytes_accessed = (B * state_dim * 2 + w1_p.size * 2 + w23_p.size * 2
                      + b_p.size * 4 + B * action_dim * 2)

    out_p = pl.pallas_call(
        _mlp_kernel,
        out_shape=jax.ShapeDtypeStruct((Bp, Dp), jnp.bfloat16),
        grid=grid,
        in_specs=[
            # x: streamed per batch tile, true feature width (last dim == full dim)
            pl.BlockSpec((TB, state_dim), lambda i: (i, 0)),
            # fc1 weight: resident, single-buffered (same block every step)
            pl.BlockSpec((state_dim, Dp), lambda i: (0, 0),
                         pipeline_mode=pl.Buffered(1)),
            # fc2/fc3 weight slab: resident, single-buffered
            pl.BlockSpec((2, Dp, Dp), lambda i: (0, 0, 0),
                         pipeline_mode=pl.Buffered(1)),
            # biases: resident, single-buffered
            pl.BlockSpec((3, Dp), lambda i: (0, 0),
                         pipeline_mode=pl.Buffered(1)),
        ],
        out_specs=pl.BlockSpec((TB, Dp), lambda i: (i, 0)),   # lane-dense bf16 slab
        compiler_params=pltpu.CompilerParams(
            dimension_semantics=("parallel",),                # megacore sharding on v7x
        ),
        cost_estimate=pl.CostEstimate(
            flops=flops, transcendentals=0, bytes_accessed=bytes_accessed),
    )(x_p, w1_p, w23_p, b_p)

    # Tiny slice + cast back to f32 so the public output matches nn.Linear.
    return out_p[:B, :action_dim].astype(jnp.float32)


def init_params(key, state_dim, action_dim, hidden_layers):
    """Synthetic init: xavier-normal weights, PyTorch-style uniform biases.

    Weights are stored as (fan_in, fan_out) — transposed vs. nn.Linear — so the
    kernel computes x @ W + b.
    """
    dims = [state_dim, hidden_layers[0], hidden_layers[1], action_dim]
    params = []
    for i in range(3):
        key, kw, kb = jax.random.split(key, 3)
        fan_in, fan_out = dims[i], dims[i + 1]
        std = (2.0 / (fan_in + fan_out)) ** 0.5  # xavier_normal, gain=1
        w = std * jax.random.normal(kw, (fan_in, fan_out), dtype=jnp.float32)
        bound = 1.0 / (fan_in ** 0.5)
        b = jax.random.uniform(kb, (fan_out,), jnp.float32, -bound, bound)
        params.extend([w, b])
    return params


def mlp_policy_ref(x, w1, b1, w2, b2, w3, b3):
    """Reference with the same bf16-operand / f32-accumulate numerics."""
    bf = jnp.bfloat16
    h = jnp.dot(x.astype(bf), w1.astype(bf), preferred_element_type=jnp.float32)
    h = jax.nn.relu(h + b1).astype(bf)
    h = jnp.dot(h, w2.astype(bf), preferred_element_type=jnp.float32)
    h = jax.nn.relu(h + b2).astype(bf)
    h = jnp.dot(h, w3.astype(bf), preferred_element_type=jnp.float32)
    return h + b3


if __name__ == "__main__":
    key = jax.random.PRNGKey(0)

    batch = 256          # 2 batch tiles of 128 -> exercises the grid + v7x megacore
    state_dim = 16
    hidden_layers = (32, 32)
    action_dim = 4

    key, kx = jax.random.split(key)
    x = jax.random.normal(kx, (batch, state_dim), dtype=jnp.float32)

    w1, b1, w2, b2, w3, b3 = init_params(key, state_dim, action_dim, hidden_layers)

    # Pack/pad parameters ONCE, outside the per-call hot path.
    w1_p, w23_p, b_p, dims = pack_params(w1, b1, w2, b2, w3, b3)
    w1_p, w23_p, b_p = jax.block_until_ready((w1_p, w23_p, b_p))

    out = mlp_policy_forward(x, w1_p, w23_p, b_p, dims=dims)
    out = jax.block_until_ready(out)

    ref = mlp_policy_ref(x, w1, b1, w2, b2, w3, b3)
    assert out.shape == (batch, action_dim), out.shape
    # Kernel writes back bf16, so tolerance reflects bf16 rounding of the output.
    assert jnp.allclose(out, ref, atol=2e-2, rtol=2e-2), "mismatch vs reference"

    print("KERNEL_OK")
</pallas_src>

<mosaic_0001>
module attributes {stable_mosaic.version = 11 : i64} {
  func.func @_mlp_kernel(%arg0: i32, %arg1: memref<128x16xbf16, #tpu.memory_space<vmem>>, %arg2: memref<16x128xbf16, #tpu.memory_space<vmem>>, %arg3: memref<2x128x128xbf16, #tpu.memory_space<vmem>>, %arg4: memref<3x128xf32, #tpu.memory_space<vmem>>, %arg5: memref<128x128xbf16, #tpu.memory_space<vmem>>) attributes {dimension_semantics = [#tpu.dimension_semantics<parallel>], iteration_bounds = array<i64: 2>, scalar_prefetch = 0 : i64, scratch_operands = 0 : i64, tpu.core_type = #tpu.core_type<tc>, window_params = [{transform_indices = @transform_0, window_bounds = array<i64: 128, 16>}, {pipeline_mode = #tpu.pipeline_mode<synchronous>, transform_indices = @transform_1, window_bounds = array<i64: 16, 128>}, {pipeline_mode = #tpu.pipeline_mode<synchronous>, transform_indices = @transform_2, window_bounds = array<i64: 2, 128, 128>}, {pipeline_mode = #tpu.pipeline_mode<synchronous>, transform_indices = @transform_3, window_bounds = array<i64: 3, 128>}, {transform_indices = @transform_4, window_bounds = array<i64: 128, 128>}]} {
    %c0 = arith.constant 0 : index
    %c0_0 = arith.constant 0 : index
    %0 = vector.load %arg1[%c0, %c0_0] : memref<128x16xbf16, #tpu.memory_space<vmem>>, vector<128x16xbf16>
    %c0_1 = arith.constant 0 : index
    %c0_2 = arith.constant 0 : index
    %1 = vector.load %arg2[%c0_1, %c0_2] : memref<16x128xbf16, #tpu.memory_space<vmem>>, vector<16x128xbf16>
    %cst = arith.constant dense<0.000000e+00> : vector<128x128xf32>
    %2 = tpu.matmul %0, %1, %cst {dimension_numbers = #tpu.dot_dimension_numbers<[1], [0], [0], [1], [0, 0, 1, 1], [], []>} : vector<128x16xbf16>, vector<16x128xbf16>, vector<128x128xf32> -> vector<128x128xf32>
    %c0_3 = arith.constant 0 : index
    %c0_4 = arith.constant 0 : index
    %3 = vector.load %arg4[%c0_3, %c0_4] : memref<3x128xf32, #tpu.memory_space<vmem>>, vector<1x128xf32>
    %4 = vector.broadcast %3 : vector<1x128xf32> to vector<128x128xf32>
    %5 = arith.addf %2, %4 : vector<128x128xf32>
    %cst_5 = arith.constant 0.000000e+00 : f32
    %6 = vector.broadcast %cst_5 : f32 to vector<128x128xf32>
    %7 = arith.maximumf %5, %6 : vector<128x128xf32>
    %8 = arith.truncf %7 : vector<128x128xf32> to vector<128x128xbf16>
    %c0_6 = arith.constant 0 : index
    %c0_7 = arith.constant 0 : index
    %c0_8 = arith.constant 0 : index
    %9 = vector.load %arg3[%c0_6, %c0_7, %c0_8] : memref<2x128x128xbf16, #tpu.memory_space<vmem>>, vector<1x128x128xbf16>
    %10 = vector.shape_cast %9 : vector<1x128x128xbf16> to vector<128x128xbf16>
    %cst_9 = arith.constant dense<0.000000e+00> : vector<128x128xf32>
    %11 = tpu.matmul %8, %10, %cst_9 {dimension_numbers = #tpu.dot_dimension_numbers<[1], [0], [0], [1], [0, 0, 1, 1], [], []>} : vector<128x128xbf16>, vector<128x128xbf16>, vector<128x128xf32> -> vector<128x128xf32>
    %c1 = arith.constant 1 : index
    %c0_10 = arith.constant 0 : index
    %12 = vector.load %arg4[%c1, %c0_10] : memref<3x128xf32, #tpu.memory_space<vmem>>, vector<1x128xf32>
    %13 = vector.broadcast %12 : vector<1x128xf32> to vector<128x128xf32>
    %14 = arith.addf %11, %13 : vector<128x128xf32>
    %cst_11 = arith.constant 0.000000e+00 : f32
    %15 = vector.broadcast %cst_11 : f32 to vector<128x128xf32>
    %16 = arith.maximumf %14, %15 : vector<128x128xf32>
    %17 = arith.truncf %16 : vector<128x128xf32> to vector<128x128xbf16>
    %c1_12 = arith.constant 1 : index
    %c0_13 = arith.constant 0 : index
    %c0_14 = arith.constant 0 : index
    %18 = vector.load %arg3[%c1_12, %c0_13, %c0_14] : memref<2x128x128xbf16, #tpu.memory_space<vmem>>, vector<1x128x128xbf16>
    %19 = vector.shape_cast %18 : vector<1x128x128xbf16> to vector<128x128xbf16>
    %cst_15 = arith.constant dense<0.000000e+00> : vector<128x128xf32>
    %20 = tpu.matmul %17, %19, %cst_15 {dimension_numbers = #tpu.dot_dimension_numbers<[1], [0], [0], [1], [0, 0, 1, 1], [], []>} : vector<128x128xbf16>, vector<128x128xbf16>, vector<128x128xf32> -> vector<128x128xf32>
    %c2 = arith.constant 2 : index
    %c0_16 = arith.constant 0 : index
    %21 = vector.load %arg4[%c2, %c0_16] : memref<3x128xf32, #tpu.memory_space<vmem>>, vector<1x128xf32>
    %22 = vector.broadcast %21 : vector<1x128xf32> to vector<128x128xf32>
    %23 = arith.addf %20, %22 : vector<128x128xf32>
    %24 = arith.truncf %23 : vector<128x128xf32> to vector<128x128xbf16>
    %c0_17 = arith.constant 0 : index
    %c0_18 = arith.constant 0 : index
    %25 = vector.load %arg5[%c0_17, %c0_18] : memref<128x128xbf16, #tpu.memory_space<vmem>>, vector<128x128xbf16>
    tpu.vector_store %arg5[%c0_17, %c0_18], %24 {strides = array<i32>} : memref<128x128xbf16, #tpu.memory_space<vmem>>, vector<128x128xbf16>,
    return
  }
  func.func @transform_0(%arg0: i32) -> (i32, i32) {
    %c0_i32 = arith.constant 0 : i32
    %c0_i32_0 = arith.constant 0 : i32
    return %arg0, %c0_i32 : i32, i32
  }
  func.func @transform_1(%arg0: i32) -> (i32, i32) {
    %c0_i32 = arith.constant 0 : i32
    %c0_i32_0 = arith.constant 0 : i32
    %c0_i32_1 = arith.constant 0 : i32
    return %c0_i32, %c0_i32_0 : i32, i32
  }
  func.func @transform_2(%arg0: i32) -> (i32, i32, i32) {
    %c0_i32 = arith.constant 0 : i32
    %c0_i32_0 = arith.constant 0 : i32
    %c0_i32_1 = arith.constant 0 : i32
    %c0_i32_2 = arith.constant 0 : i32
    return %c0_i32, %c0_i32_0, %c0_i32_1 : i32, i32, i32
  }
  func.func @transform_3(%arg0: i32) -> (i32, i32) {
    %c0_i32 = arith.constant 0 : i32
    %c0_i32_0 = arith.constant 0 : i32
    %c0_i32_1 = arith.constant 0 : i32
    return %c0_i32, %c0_i32_0 : i32, i32
  }
  func.func @transform_4(%arg0: i32) -> (i32, i32) {
    %c0_i32 = arith.constant 0 : i32
    %c0_i32_0 = arith.constant 0 : i32
    return %arg0, %c0_i32 : i32, i32
  }
}

</mosaic_0001>

<llo_original>
// kernel: mlp_policy_forward.1
$region0: #{mlp_policy_forward.1}
  #allocation0 [shape = 'u32[]', space=smem, size = 0x4, offset = 0x4, fixed_abs, tag = 'smem constant byte address 0x4 - core index']
  #allocation1 [shape = 'u32[144,128]{1,0:T(1,128)}', space=vmem, size = 0x12000, scoped, tag = 'internal scratch']
  %s0 = inlined_call_operand.vmem [shape: bf16[256,16], index: 0, kind: input, shape index: {}]
  %s1 = inlined_call_operand.vmem [shape: bf16[16,128], index: 1, kind: input, shape index: {}]
  %s2 = inlined_call_operand.vmem [shape: bf16[2,128,128], index: 2, kind: input, shape index: {}]
  %s3 = inlined_call_operand.vmem [shape: f32[3,128], index: 3, kind: input, shape index: {}]
  %s4 = inlined_call_operand.vmem [shape: bf16[256,128], index: 4, kind: output, shape index: {}]
  %s5 = sld [smem:[#allocation0]]
  $region49: #{mlp_policy_forward.1} parent=0
    _
  %s7 = ssub.s32 1, %s5
  %s8 = scalar_select 0, %s7, %s5
  loop: start=0, step=1, limit=4
  $region2: #{mlp_policy_forward.1} parent=0 // loop_pre_header
    _
  $region3: #{mlp_policy_forward.1} parent=0 // loop_header
    %s10 = sphi 0, %s14
    %p11 = scmp.ge.s32.totalorder %s10, 4
    %s20 = sphi 0, %s22
    %s23 = sphi 0, %s20
    %s24 = sphi 0, %s23
    %s40 = sphi 0, %s24
    %s44 = sphi 0, %s44
    %s46 = sphi 0, %s44
    %s47 = sphi 0, %s46
    %s61 = sphi 0, %s47
    %s65 = sphi 0, %s65
    %s67 = sphi 0, %s65
    %s68 = sphi 0, %s67
    %s82 = sphi 0, %s68
    %s86 = sphi 0, %s86
    %s88 = sphi 0, %s86
    %s89 = sphi 0, %s88
    %s103 = sphi 0, %s89
    %s109 = sphi 0, %s111
    %s112 = sphi 0, %s109
    %s113 = sphi 0, %s112
    %s129 = sphi 0, %s113
  $region4: #{mlp_policy_forward.1} parent=0 // loop_header_branch
    %13 = sbr.rel (%p11) target = $region8
  $region5: #{mlp_policy_forward.1} parent=0 // loop_body
    %s15 = ssub.s32 %s10, 1
    %s16 = ssub.s32 %s10, 2
    %s17 = sadd.s32 %s10, 1
    %s18 = ssub.s32 %s10, %s17
    %p19 = scmp.eq.s32.totalorder %s18, 0
    %s21 = sadd.s32 %s20, 1
    %s22 = scalar_select %p19, %s20, %s21
    %p25 = pneg %p19
    %p26 = scmp.eq.s32.totalorder %s10, 1
    %p27 = por %p25, %p26
    %p28 = scmp.ne.s32.totalorder %s20, %s23
    %p29 = scmp.eq.s32.totalorder %s10, 0
    %p30 = por %p28, %p29
    %p31 = scmp.ne.s32.totalorder %s20, %s23
    %p32 = scmp.eq.s32.totalorder %s15, 1
    %p33 = por %p31, %p32
    %p34 = scmp.ne.s32.totalorder %s23, %s24
    %p35 = scmp.eq.s32.totalorder %s15, 0
    %p36 = por %p34, %p35
    %p37 = scmp.ne.s32.totalorder %s23, %s24
    %p38 = scmp.eq.s32.totalorder %s16, 1
    %p39 = por %p37, %p38
    %p41 = scmp.ne.s32.totalorder %s24, %s40
    %p42 = scmp.eq.s32.totalorder %s16, 0
    %p43 = por %p41, %p42
    %s45 = sadd.s32 %s44, 1
    %p48 = scmp.eq.s32.totalorder %s10, 1
    %p49 = scmp.ne.s32.totalorder %s44, %s46
    %p50 = scmp.eq.s32.totalorder %s10, 0
    %p51 = por %p49, %p50
    %p52 = scmp.ne.s32.totalorder %s44, %s46
    %p53 = scmp.eq.s32.totalorder %s15, 1
    %p54 = por %p52, %p53
    %p55 = scmp.ne.s32.totalorder %s46, %s47
    %p56 = scmp.eq.s32.totalorder %s15, 0
    %p57 = por %p55, %p56
    %p58 = scmp.ne.s32.totalorder %s46, %s47
    %p59 = scmp.eq.s32.totalorder %s16, 1
    %p60 = por %p58, %p59
    %p62 = scmp.ne.s32.totalorder %s47, %s61
    %p63 = scmp.eq.s32.totalorder %s16, 0
    %p64 = por %p62, %p63
    %s66 = sadd.s32 %s65, 1
    %p69 = scmp.eq.s32.totalorder %s10, 1
    %p70 = scmp.ne.s32.totalorder %s65, %s67
    %p71 = scmp.eq.s32.totalorder %s10, 0
    %p72 = por %p70, %p71
    %p73 = scmp.ne.s32.totalorder %s65, %s67
    %p74 = scmp.eq.s32.totalorder %s15, 1
    %p75 = por %p73, %p74
    %p76 = scmp.ne.s32.totalorder %s67, %s68
    %p77 = scmp.eq.s32.totalorder %s15, 0
    %p78 = por %p76, %p77
    %p79 = scmp.ne.s32.totalorder %s67, %s68
    %p80 = scmp.eq.s32.totalorder %s16, 1
    %p81 = por %p79, %p80
    %p83 = scmp.ne.s32.totalorder %s68, %s82
    %p84 = scmp.eq.s32.totalorder %s16, 0
    %p85 = por %p83, %p84
    %s87 = sadd.s32 %s86, 1
    %p90 = scmp.eq.s32.totalorder %s10, 1
    %p91 = scmp.ne.s32.totalorder %s86, %s88
    %p92 = scmp.eq.s32.totalorder %s10, 0
    %p93 = por %p91, %p92
    %p94 = scmp.ne.s32.totalorder %s86, %s88
    %p95 = scmp.eq.s32.totalorder %s15, 1
    %p96 = por %p94, %p95
    %p97 = scmp.ne.s32.totalorder %s88, %s89
    %p98 = scmp.eq.s32.totalorder %s15, 0
    %p99 = por %p97, %p98
    %p100 = scmp.ne.s32.totalorder %s88, %s89
    %p101 = scmp.eq.s32.totalorder %s16, 1
    %p102 = por %p100, %p101
    %p104 = scmp.ne.s32.totalorder %s89, %s103
    %p105 = scmp.eq.s32.totalorder %s16, 0
    %p106 = por %p104, %p105
    %s107 = ssub.s32 %s10, %s17
    %p108 = scmp.eq.s32.totalorder %s107, 0
    %s110 = sadd.s32 %s109, 1
    %s111 = scalar_select %p108, %s109, %s110
    %p114 = pneg %p108
    %p115 = scmp.eq.s32.totalorder %s10, 1
    %p116 = por %p114, %p115
    %p117 = scmp.ne.s32.totalorder %s109, %s112
    %p118 = scmp.eq.s32.totalorder %s10, 0
    %p119 = por %p117, %p118
    %p120 = scmp.ne.s32.totalorder %s109, %s112
    %p121 = scmp.eq.s32.totalorder %s15, 1
    %p122 = por %p120, %p121
    %p123 = scmp.ne.s32.totalorder %s112, %s113
    %p124 = scmp.eq.s32.totalorder %s15, 0
    %p125 = por %p123, %p124
    %p126 = scmp.ne.s32.totalorder %s112, %s113
    %p127 = scmp.eq.s32.totalorder %s16, 1
    %p128 = por %p126, %p127
    %p130 = scmp.ne.s32.totalorder %s113, %s129
    %p131 = scmp.eq.s32.totalorder %s16, 0
    %p132 = por %p130, %p131
    %p133 = scmp.le.s32.totalorder 1, %s10
    %p134 = scmp.lt.s32.totalorder %s10, 3
    %p135 = pnand %p133, %p134
    %p136 = pneg %p135
    // Predicated region
    $region9: #{mlp_policy_forward.1} parent=5 // pred_check
      _
    $region10: #{mlp_policy_forward.1} parent=5 // pred_check_branch
      %138 = sbr.rel (%p135) target = $region12
    $region11: #{mlp_policy_forward.1} parent=5 // pred_region
      %s139 = ssub.s32 %s10, 1
      // Predicated region
      $region13: #{mlp_policy_forward.1} parent=11 // pred_check
        %p140 = pneg %p57
      $region14: #{mlp_policy_forward.1} parent=11 // pred_check_branch
        %142 = sbr.rel (%p140) target = $region16
      $region15: #{mlp_policy_forward.1} parent=11 // pred_region
        _
      $region16: #{mlp_policy_forward.1} parent=11 // pred_fallthru
        _
      // Predicated region
      $region17: #{mlp_policy_forward.1} parent=11 // pred_check
        %p143 = pneg %p78
      $region18: #{mlp_policy_forward.1} parent=11 // pred_check_branch
        %145 = sbr.rel (%p143) target = $region20
      $region19: #{mlp_policy_forward.1} parent=11 // pred_region
        _
      $region20: #{mlp_policy_forward.1} parent=11 // pred_fallthru
        _
      // Predicated region
      $region21: #{mlp_policy_forward.1} parent=11 // pred_check
        %p146 = pneg %p99
      $region22: #{mlp_policy_forward.1} parent=11 // pred_check_branch
        %148 = sbr.rel (%p146) target = $region24
      $region23: #{mlp_policy_forward.1} parent=11 // pred_region
        _
      $region24: #{mlp_policy_forward.1} parent=11 // pred_fallthru
        _
    $region12: #{mlp_policy_forward.1} parent=5 // pred_fallthru
      _
    %p149 = scmp.lt.s32.totalorder %s10, 2
    // Predicated region
    $region25: #{mlp_policy_forward.1} parent=5 // pred_check
      %p150 = pneg %p149
    $region26: #{mlp_policy_forward.1} parent=5 // pred_check_branch
      %152 = sbr.rel (%p150) target = $region28
    $region27: #{mlp_policy_forward.1} parent=5 // pred_region
      // Predicated region
      $region29: #{mlp_policy_forward.1} parent=27 // pred_check
        %p153 = pneg %p30
      $region30: #{mlp_policy_forward.1} parent=27 // pred_check_branch
        %155 = sbr.rel (%p153) target = $region32
      $region31: #{mlp_policy_forward.1} parent=27 // pred_region
        %s156 = smul.u32 16, %s10
        %p157 = scmp.lt.s32.totalorder %s156, 31
        %s158 = scalar_select %p157, %s156, 31
        %s159 = smul.addr %s158, 4
        %s160 = scalar_lea.vmem %s0, %s159
        %s161 = smul.u32 16, %s10
      $region32: #{mlp_policy_forward.1} parent=27 // pred_fallthru
        _
    $region28: #{mlp_policy_forward.1} parent=5 // pred_fallthru
      _
    %p162 = scmp.le.s32.totalorder 1, %s10
    %p163 = scmp.lt.s32.totalorder %s10, 3
    %p164 = pnand %p162, %p163
    %p165 = pneg %p164
    // Predicated region
    $region33: #{mlp_policy_forward.1} parent=5 // pred_check
      _
    $region34: #{mlp_policy_forward.1} parent=5 // pred_check_branch
      %167 = sbr.rel (%p164) target = $region36
    $region35: #{mlp_policy_forward.1} parent=5 // pred_region
      %s168 = ssub.s32 %s10, 1
      %s169 = smul.u32 16, %s15
      %p170 = scmp.lt.s32.totalorder %s169, 31
      %s171 = scalar_select %p170, %s169, 31
      %s172 = smul.addr %s171, 4
      %s173 = scalar_lea.vmem %s0, %s172
      %p174 = pneg %p36
      %p175 = pneg %p33
      %p176 = pneg %p57
      %p177 = pneg %p54
      %p178 = pneg %p78
      %p179 = pneg %p75
      %p180 = pneg %p99
      %p181 = pneg %p96
      %p182 = pneg %p125
      %p183 = pneg %p122
      %s184 = smul.u32 16, %s15
      %p185 = scmp.lt.s32.totalorder %s184, 31
      %s186 = scalar_select %p185, %s184, 31
      %s187 = smul.addr %s186, 4
      %s188 = scalar_lea.vmem %s4, %s187
      %s189 = smul.u32 16, %s15
      %p190 = scmp.lt.s32.totalorder %s189, 31
      %s191 = scalar_select %p190, %s189, 31
      %s192 = smul.addr %s191, 4
      %s193 = scalar_lea.vmem %s0, %s192
      %s194 = smul.u32 16, %s15
      %s195 = smul.u32 16, %s15
      %p196 = scmp.lt.s32.totalorder %s195, 31
      %s197 = scalar_select %p196, %s195, 31
      %s198 = smul.addr %s197, 4
      %s199 = scalar_lea.vmem %s4, %s198
      %s200 = smul.u32 16, %s15
      %v202 = vld [vmem:[%s193] sm:$0xf]
      %v203 = vld [vmem:[%s193 + $0x4] sm:$0xf]
      %v204 = vld [vmem:[%s193 + $0x8] sm:$0xf]
      %v205 = vld [vmem:[%s193 + $0xc] sm:$0xf]
      %v206 = vld [vmem:[%s193 + $0x10] sm:$0xf]
      %v207 = vld [vmem:[%s193 + $0x14] sm:$0xf]
      %v208 = vld [vmem:[%s193 + $0x18] sm:$0xf]
      %v209 = vld [vmem:[%s193 + $0x1c] sm:$0xf]
      %v210 = vld [vmem:[%s193 + $0x20] sm:$0xf]
      %v211 = vld [vmem:[%s193 + $0x24] sm:$0xf]
      %v212 = vld [vmem:[%s193 + $0x28] sm:$0xf]
      %v213 = vld [vmem:[%s193 + $0x2c] sm:$0xf]
      %v214 = vld [vmem:[%s193 + $0x30] sm:$0xf]
      %v215 = vld [vmem:[%s193 + $0x34] sm:$0xf]
      %v216 = vld [vmem:[%s193 + $0x38] sm:$0xf]
      %v217 = vld [vmem:[%s193 + $0x3c] sm:$0xf]
      %v218 = vld [vmem:[%s1] sm:$0xf]
      %v219 = vld [vmem:[%s1 + $0x4] sm:$0xf]
      %v220 = vld [vmem:[%s3] sm:$0x1]
      %v221 = vlaneseq
      %v222 = vshrl.u32 %v221, 7
      %v223 = vsub.s32 0, %v222
      %v224 = vrot.slane %v220, %v223
      %v241 = vunpack.c.l.b16 %v202
      %v242 = vunpack.c.l.b16 %v203
      %v243 = vunpack.c.l.b16 %v204
      %v244 = vunpack.c.l.b16 %v205
      %v245 = vunpack.c.l.b16 %v206
      %v246 = vunpack.c.l.b16 %v207
      %v247 = vunpack.c.l.b16 %v208
      %v248 = vunpack.c.l.b16 %v209
      %v249 = vunpack.c.l.b16 %v210
      %v250 = vunpack.c.l.b16 %v211
      %v251 = vunpack.c.l.b16 %v212
      %v252 = vunpack.c.l.b16 %v213
      %v253 = vunpack.c.l.b16 %v214
      %v254 = vunpack.c.l.b16 %v215
      %v255 = vunpack.c.l.b16 %v216
      %v256 = vunpack.c.l.b16 %v217
      %v257 = vpack.c.b16 %v242, %v241
      %v258 = vpack.c.b16 %v244, %v243
      %v259 = vpack.c.b16 %v246, %v245
      %v260 = vpack.c.b16 %v248, %v247
      %v261 = vpack.c.b16 %v250, %v249
      %v262 = vpack.c.b16 %v252, %v251
      %v263 = vpack.c.b16 %v254, %v253
      %v264 = vpack.c.b16 %v256, %v255
      %v267 = vunpack.c.l.b16 %v218
      %v268 = vunpack.c.l.b16 %v219
      %v269 = vpack.c.b16 %v268, %v267
      %vm271 = vcmask 130048
      %v273 = vsel %vm271, %v257, 0
      %v276 = vsel %vm271, %v258, 0
      %v279 = vsel %vm271, %v259, 0
      %v282 = vsel %vm271, %v260, 0
      %v285 = vsel %vm271, %v261, 0
      %v288 = vsel %vm271, %v262, 0
      %v291 = vsel %vm271, %v263, 0
      %v294 = vsel %vm271, %v264, 0
      %296 = vmatprep.subr.bf16.mxu0 0
      %297 = vmatpush1.bf16.msra.mxu0 0
      %298 = vmatprep.subr.bf16.mxu0 0
      %299 = vmatpush1.bf16.msra.mxu0 0
      %300 = vmatprep.subr.bf16.mxu0 0
      %301 = vmatpush1.bf16.msra.mxu0 0
      %302 = vmatprep.subr.bf16.mxu0 0
      %303 = vmatpush1.bf16.msra.mxu0 0
      %304 = vmatprep.subr.bf16.mxu0 0
      %305 = vmatpush1.bf16.msra.mxu0 0
      %306 = vmatprep.subr.bf16.mxu0 0
      %307 = vmatpush1.bf16.msra.mxu0 0
      %308 = vmatprep.subr.bf16.mxu0 0
      %309 = vmatpush1.bf16.msra.mxu0 0
      %310 = vmatprep.subr.bf16.mxu0 0
      %311 = vmatpush1.bf16.msra.mxu0 %v269
      %312 = vmatprep.subr.bf16.mxu0 0
      %313 = vmatpush2.bf16.msra.mxu0 0
      %314 = vmatprep.subr.bf16.mxu0 0
      %315 = vmatpush2.bf16.msra.mxu0 0
      %316 = vmatprep.subr.bf16.mxu0 0
      %317 = vmatpush2.bf16.msra.mxu0 0
      %318 = vmatprep.subr.bf16.mxu0 0
      %319 = vmatpush2.bf16.msra.mxu0 0
      %320 = vmatprep.subr.bf16.mxu0 0
      %321 = vmatpush2.bf16.msra.mxu0 0
      %322 = vmatprep.subr.bf16.mxu0 0
      %323 = vmatpush2.bf16.msra.mxu0 0
      %324 = vmatprep.subr.bf16.mxu0 0
      %325 = vmatpush2.bf16.msra.mxu0 0
      %326 = vmatprep.subr.bf16.mxu0 0
      %327 = vmatpush2.bf16.msra.mxu0 0
      %328 = vmatprep.mubr.bf16.mxu0 0
      %329 = vmatmul.mubr.bf16.gmra.mxu0 %v273
      %v330 = vpop.f32.mrf.mxu0
      %v331 = vadd.f32 %v224, %v330
      %v332 = vpop.f32.mrf.mxu0
      %v333 = vpop.f32.mrf.mxu0
      %v334 = vadd.f32 %v224, %v333
      %v335 = vpop.f32.mrf.mxu0
      %336 = vmatprep.mubr.bf16.mxu0 0
      %337 = vmatmul.mubr.bf16.gmra.mxu0 %v276
      %v338 = vpop.f32.mrf.mxu0
      %v339 = vadd.f32 %v224, %v338
      %v340 = vpop.f32.mrf.mxu0
      %v341 = vpop.f32.mrf.mxu0
      %v342 = vadd.f32 %v224, %v341
      %v343 = vpop.f32.mrf.mxu0
      %344 = vmatprep.mubr.bf16.mxu0 0
      %345 = vmatmul.mubr.bf16.gmra.mxu0 %v279
      %v346 = vpop.f32.mrf.mxu0
      %v347 = vadd.f32 %v224, %v346
      %v348 = vpop.f32.mrf.mxu0
      %v349 = vpop.f32.mrf.mxu0
      %v350 = vadd.f32 %v224, %v349
      %v351 = vpop.f32.mrf.mxu0
      %352 = vmatprep.mubr.bf16.mxu0 0
      %353 = vmatmul.mubr.bf16.gmra.mxu0 %v282
      %v354 = vpop.f32.mrf.mxu0
      %v355 = vadd.f32 %v224, %v354
      %v356 = vpop.f32.mrf.mxu0
      %v357 = vpop.f32.mrf.mxu0
      %v358 = vadd.f32 %v224, %v357
      %v359 = vpop.f32.mrf.mxu0
      %360 = vmatprep.mubr.bf16.mxu0 0
      %361 = vmatmul.mubr.bf16.gmra.mxu0 %v285
      %v362 = vpop.f32.mrf.mxu0
      %v363 = vadd.f32 %v224, %v362
      %v364 = vpop.f32.mrf.mxu0
      %v365 = vpop.f32.mrf.mxu0
      %v366 = vadd.f32 %v224, %v365
      %v367 = vpop.f32.mrf.mxu0
      %368 = vmatprep.mubr.bf16.mxu0 0
      %369 = vmatmul.mubr.bf16.gmra.mxu0 %v288
      %v370 = vpop.f32.mrf.mxu0
      %v371 = vadd.f32 %v224, %v370
      %v372 = vpop.f32.mrf.mxu0
      %v373 = vpop.f32.mrf.mxu0
      %v374 = vadd.f32 %v224, %v373
      %v375 = vpop.f32.mrf.mxu0
      %376 = vmatprep.mubr.bf16.mxu0 0
      %377 = vmatmul.mubr.bf16.gmra.mxu0 %v291
      %v378 = vpop.f32.mrf.mxu0
      %v379 = vadd.f32 %v224, %v378
      %v380 = vpop.f32.mrf.mxu0
      %v381 = vpop.f32.mrf.mxu0
      %v382 = vadd.f32 %v224, %v381
      %v383 = vpop.f32.mrf.mxu0
      %384 = vmatprep.mubr.bf16.mxu0 0
      %385 = vmatmul.mubr.bf16.gmra.mxu0 %v294
      %v386 = vpop.f32.mrf.mxu0
      %v387 = vadd.f32 %v224, %v386
      %v388 = vpop.f32.mrf.mxu0
      %v389 = vpop.f32.mrf.mxu0
      %v390 = vadd.f32 %v224, %v389
      %v391 = vpop.f32.mrf.mxu0
      %392 = vdwg.mxu0
      %v393 = vmax.f32 %v331, 0.0
      %v394 = vmax.f32 %v334, 0.0
      %v395 = vmax.f32 %v339, 0.0
      %v396 = vmax.f32 %v342, 0.0
      %v397 = vmax.f32 %v347, 0.0
      %v398 = vmax.f32 %v350, 0.0
      %v399 = vmax.f32 %v355, 0.0
      %v400 = vmax.f32 %v358, 0.0
      %v401 = vmax.f32 %v363, 0.0
      %v402 = vmax.f32 %v366, 0.0
      %v403 = vmax.f32 %v371, 0.0
      %v404 = vmax.f32 %v374, 0.0
      %v405 = vmax.f32 %v379, 0.0
      %v406 = vmax.f32 %v382, 0.0
      %v407 = vmax.f32 %v387, 0.0
      %v408 = vmax.f32 %v390, 0.0
      %v409 = vpack.c.bf16 %v394, %v393
      %v410 = vpack.c.bf16 %v396, %v395
      %v411 = vpack.c.bf16 %v398, %v397
      %v412 = vpack.c.bf16 %v400, %v399
      %v413 = vpack.c.bf16 %v402, %v401
      %v414 = vpack.c.bf16 %v404, %v403
      %v415 = vpack.c.bf16 %v406, %v405
      %v416 = vpack.c.bf16 %v408, %v407
      %v417 = vld [vmem:[%s2] sm:$0xf]
      %v418 = vld [vmem:[%s2 + $0x4] sm:$0xf]
      %v419 = vld [vmem:[%s2 + $0x8] sm:$0xf]
      %v420 = vld [vmem:[%s2 + $0xc] sm:$0xf]
      %v421 = vld [vmem:[%s2 + $0x10] sm:$0xf]
      %v422 = vld [vmem:[%s2 + $0x14] sm:$0xf]
      %v423 = vld [vmem:[%s2 + $0x18] sm:$0xf]
      %v424 = vld [vmem:[%s2 + $0x1c] sm:$0xf]
      %v425 = vld [vmem:[%s2 + $0x20] sm:$0xf]
      %v426 = vld [vmem:[%s2 + $0x24] sm:$0xf]
      %v427 = vld [vmem:[%s2 + $0x28] sm:$0xf]
      %v428 = vld [vmem:[%s2 + $0x2c] sm:$0xf]
      %v429 = vld [vmem:[%s2 + $0x30] sm:$0xf]
      %v430 = vld [vmem:[%s2 + $0x34] sm:$0xf]
      %v431 = vld [vmem:[%s2 + $0x38] sm:$0xf]
      %v432 = vld [vmem:[%s2 + $0x3c] sm:$0xf]
      %v433 = vld [vmem:[%s3 + $0x1] sm:$0x1]
      %v434 = vlaneseq
      %v435 = vshrl.u32 %v434, 7
      %v436 = vsub.s32 0, %v435
      %v437 = vrot.slane %v433, %v436
      %v454 = vunpack.c.l.b16 %v417
      %v455 = vunpack.c.l.b16 %v418
      %v456 = vunpack.c.l.b16 %v419
      %v457 = vunpack.c.l.b16 %v420
      %v458 = vunpack.c.l.b16 %v421
      %v459 = vunpack.c.l.b16 %v422
      %v460 = vunpack.c.l.b16 %v423
      %v461 = vunpack.c.l.b16 %v424
      %v462 = vunpack.c.l.b16 %v425
      %v463 = vunpack.c.l.b16 %v426
      %v464 = vunpack.c.l.b16 %v427
      %v465 = vunpack.c.l.b16 %v428
      %v466 = vunpack.c.l.b16 %v429
      %v467 = vunpack.c.l.b16 %v430
      %v468 = vunpack.c.l.b16 %v431
      %v469 = vunpack.c.l.b16 %v432
      %v470 = vpack.c.b16 %v455, %v454
      %v471 = vpack.c.b16 %v457, %v456
      %v472 = vpack.c.b16 %v459, %v458
      %v473 = vpack.c.b16 %v461, %v460
      %v474 = vpack.c.b16 %v463, %v462
      %v475 = vpack.c.b16 %v465, %v464
      %v476 = vpack.c.b16 %v467, %v466
      %v477 = vpack.c.b16 %v469, %v468
      %486 = vmatprep.subr.bf16.mxu0 0
      %487 = vmatpush1.bf16.msra.mxu0 %v477
      %488 = vmatprep.subr.bf16.mxu0 0
      %489 = vmatpush1.bf16.msra.mxu0 %v476
      %490 = vmatprep.subr.bf16.mxu0 0
      %491 = vmatpush1.bf16.msra.mxu0 %v475
      %492 = vmatprep.subr.bf16.mxu0 0
      %493 = vmatpush1.bf16.msra.mxu0 %v474
      %494 = vmatprep.subr.bf16.mxu0 0
      %495 = vmatpush1.bf16.msra.mxu0 %v473
      %496 = vmatprep.subr.bf16.mxu0 0
      %497 = vmatpush1.bf16.msra.mxu0 %v472
      %498 = vmatprep.subr.bf16.mxu0 0
      %499 = vmatpush1.bf16.msra.mxu0 %v471
      %500 = vmatprep.subr.bf16.mxu0 0
      %501 = vmatpush1.bf16.msra.mxu0 %v470
      %502 = vmatprep.subr.bf16.mxu0 0
      %503 = vmatpush2.bf16.msra.mxu0 0
      %504 = vmatprep.subr.bf16.mxu0 0
      %505 = vmatpush2.bf16.msra.mxu0 0
      %506 = vmatprep.subr.bf16.mxu0 0
      %507 = vmatpush2.bf16.msra.mxu0 0
      %508 = vmatprep.subr.bf16.mxu0 0
      %509 = vmatpush2.bf16.msra.mxu0 0
      %510 = vmatprep.subr.bf16.mxu0 0
      %511 = vmatpush2.bf16.msra.mxu0 0
      %512 = vmatprep.subr.bf16.mxu0 0
      %513 = vmatpush2.bf16.msra.mxu0 0
      %514 = vmatprep.subr.bf16.mxu0 0
      %515 = vmatpush2.bf16.msra.mxu0 0
      %516 = vmatprep.subr.bf16.mxu0 0
      %517 = vmatpush2.bf16.msra.mxu0 0
      %518 = vmatprep.mubr.bf16.mxu0 0
      %519 = vmatmul.mubr.bf16.gmra.mxu0 %v409
      %v520 = vpop.f32.mrf.mxu0
      %v521 = vadd.f32 %v437, %v520
      %v522 = vpop.f32.mrf.mxu0
      %v523 = vpop.f32.mrf.mxu0
      %v524 = vadd.f32 %v437, %v523
      %v525 = vpop.f32.mrf.mxu0
      %526 = vmatprep.mubr.bf16.mxu0 0
      %527 = vmatmul.mubr.bf16.gmra.mxu0 %v410
      %v528 = vpop.f32.mrf.mxu0
      %v529 = vadd.f32 %v437, %v528
      %v530 = vpop.f32.mrf.mxu0
      %v531 = vpop.f32.mrf.mxu0
      %v532 = vadd.f32 %v437, %v531
      %v533 = vpop.f32.mrf.mxu0
      %534 = vmatprep.mubr.bf16.mxu0 0
      %535 = vmatmul.mubr.bf16.gmra.mxu0 %v411
      %v536 = vpop.f32.mrf.mxu0
      %v537 = vadd.f32 %v437, %v536
      %v538 = vpop.f32.mrf.mxu0
      %v539 = vpop.f32.mrf.mxu0
      %v540 = vadd.f32 %v437, %v539
      %v541 = vpop.f32.mrf.mxu0
      %542 = vmatprep.mubr.bf16.mxu0 0
      %543 = vmatmul.mubr.bf16.gmra.mxu0 %v412
      %v544 = vpop.f32.mrf.mxu0
      %v545 = vadd.f32 %v437, %v544
      %v546 = vpop.f32.mrf.mxu0
      %v547 = vpop.f32.mrf.mxu0
      %v548 = vadd.f32 %v437, %v547
      %v549 = vpop.f32.mrf.mxu0
      %550 = vmatprep.mubr.bf16.mxu0 0
      %551 = vmatmul.mubr.bf16.gmra.mxu0 %v413
      %v552 = vpop.f32.mrf.mxu0
      %v553 = vadd.f32 %v437, %v552
      %v554 = vpop.f32.mrf.mxu0
      %v555 = vpop.f32.mrf.mxu0
      %v556 = vadd.f32 %v437, %v555
      %v557 = vpop.f32.mrf.mxu0
      %558 = vmatprep.mubr.bf16.mxu0 0
      %559 = vmatmul.mubr.bf16.gmra.mxu0 %v414
      %v560 = vpop.f32.mrf.mxu0
      %v561 = vadd.f32 %v437, %v560
      %v562 = vpop.f32.mrf.mxu0
      %v563 = vpop.f32.mrf.mxu0
      %v564 = vadd.f32 %v437, %v563
      %v565 = vpop.f32.mrf.mxu0
      %566 = vmatprep.mubr.bf16.mxu0 0
      %567 = vmatmul.mubr.bf16.gmra.mxu0 %v415
      %v568 = vpop.f32.mrf.mxu0
      %v569 = vadd.f32 %v437, %v568
      %v570 = vpop.f32.mrf.mxu0
      %v571 = vpop.f32.mrf.mxu0
      %v572 = vadd.f32 %v437, %v571
      %v573 = vpop.f32.mrf.mxu0
      %574 = vmatprep.mubr.bf16.mxu0 0
      %575 = vmatmul.mubr.bf16.gmra.mxu0 %v416
      %v576 = vpop.f32.mrf.mxu0
      %v577 = vadd.f32 %v437, %v576
      %v578 = vpop.f32.mrf.mxu0
      %v579 = vpop.f32.mrf.mxu0
      %v580 = vadd.f32 %v437, %v579
      %v581 = vpop.f32.mrf.mxu0
      %582 = vdwg.mxu0
      %v583 = vmax.f32 %v521, 0.0
      %v584 = vmax.f32 %v524, 0.0
      %v585 = vmax.f32 %v529, 0.0
      %v586 = vmax.f32 %v532, 0.0
      %v587 = vmax.f32 %v537, 0.0
      %v588 = vmax.f32 %v540, 0.0
      %v589 = vmax.f32 %v545, 0.0
      %v590 = vmax.f32 %v548, 0.0
      %v591 = vmax.f32 %v553, 0.0
      %v592 = vmax.f32 %v556, 0.0
      %v593 = vmax.f32 %v561, 0.0
      %v594 = vmax.f32 %v564, 0.0
      %v595 = vmax.f32 %v569, 0.0
      %v596 = vmax.f32 %v572, 0.0
      %v597 = vmax.f32 %v577, 0.0
      %v598 = vmax.f32 %v580, 0.0
      %v599 = vpack.c.bf16 %v584, %v583
      %v600 = vpack.c.bf16 %v586, %v585
      %v601 = vpack.c.bf16 %v588, %v587
      %v602 = vpack.c.bf16 %v590, %v589
      %v603 = vpack.c.bf16 %v592, %v591
      %v604 = vpack.c.bf16 %v594, %v593
      %v605 = vpack.c.bf16 %v596, %v595
      %v606 = vpack.c.bf16 %v598, %v597
      %s607 = scalar_lea.vmem %s2, 64
      %v608 = vld [vmem:[%s607] sm:$0xf]
      %v609 = vld [vmem:[%s607 + $0x4] sm:$0xf]
      %v610 = vld [vmem:[%s607 + $0x8] sm:$0xf]
      %v611 = vld [vmem:[%s607 + $0xc] sm:$0xf]
      %v612 = vld [vmem:[%s607 + $0x10] sm:$0xf]
      %v613 = vld [vmem:[%s607 + $0x14] sm:$0xf]
      %v614 = vld [vmem:[%s607 + $0x18] sm:$0xf]
      %v615 = vld [vmem:[%s607 + $0x1c] sm:$0xf]
      %v616 = vld [vmem:[%s607 + $0x20] sm:$0xf]
      %v617 = vld [vmem:[%s607 + $0x24] sm:$0xf]
      %v618 = vld [vmem:[%s607 + $0x28] sm:$0xf]
      %v619 = vld [vmem:[%s607 + $0x2c] sm:$0xf]
      %v620 = vld [vmem:[%s607 + $0x30] sm:$0xf]
      %v621 = vld [vmem:[%s607 + $0x34] sm:$0xf]
      %v622 = vld [vmem:[%s607 + $0x38] sm:$0xf]
      %v623 = vld [vmem:[%s607 + $0x3c] sm:$0xf]
      %v624 = vld [vmem:[%s3 + $0x2] sm:$0x1]
      %v625 = vlaneseq
      %v626 = vshrl.u32 %v625, 7
      %v627 = vsub.s32 0, %v626
      %v628 = vrot.slane %v624, %v627
      %v645 = vunpack.c.l.b16 %v608
      %v646 = vunpack.c.l.b16 %v609
      %v647 = vunpack.c.l.b16 %v610
      %v648 = vunpack.c.l.b16 %v611
      %v649 = vunpack.c.l.b16 %v612
      %v650 = vunpack.c.l.b16 %v613
      %v651 = vunpack.c.l.b16 %v614
      %v652 = vunpack.c.l.b16 %v615
      %v653 = vunpack.c.l.b16 %v616
      %v654 = vunpack.c.l.b16 %v617
      %v655 = vunpack.c.l.b16 %v618
      %v656 = vunpack.c.l.b16 %v619
      %v657 = vunpack.c.l.b16 %v620
      %v658 = vunpack.c.l.b16 %v621
      %v659 = vunpack.c.l.b16 %v622
      %v660 = vunpack.c.l.b16 %v623
      %v661 = vpack.c.b16 %v646, %v645
      %v662 = vpack.c.b16 %v648, %v647
      %v663 = vpack.c.b16 %v650, %v649
      %v664 = vpack.c.b16 %v652, %v651
      %v665 = vpack.c.b16 %v654, %v653
      %v666 = vpack.c.b16 %v656, %v655
      %v667 = vpack.c.b16 %v658, %v657
      %v668 = vpack.c.b16 %v660, %v659
      %677 = vmatprep.subr.bf16.mxu0 0
      %678 = vmatpush1.bf16.msra.mxu0 %v668
      %679 = vmatprep.subr.bf16.mxu0 0
      %680 = vmatpush1.bf16.msra.mxu0 %v667
      %681 = vmatprep.subr.bf16.mxu0 0
      %682 = vmatpush1.bf16.msra.mxu0 %v666
      %683 = vmatprep.subr.bf16.mxu0 0
      %684 = vmatpush1.bf16.msra.mxu0 %v665
      %685 = vmatprep.subr.bf16.mxu0 0
      %686 = vmatpush1.bf16.msra.mxu0 %v664
      %687 = vmatprep.subr.bf16.mxu0 0
      %688 = vmatpush1.bf16.msra.mxu0 %v663
      %689 = vmatprep.subr.bf16.mxu0 0
      %690 = vmatpush1.bf16.msra.mxu0 %v662
      %691 = vmatprep.subr.bf16.mxu0 0
      %692 = vmatpush1.bf16.msra.mxu0 %v661
      %693 = vmatprep.subr.bf16.mxu0 0
      %694 = vmatpush2.bf16.msra.mxu0 0
      %695 = vmatprep.subr.bf16.mxu0 0
      %696 = vmatpush2.bf16.msra.mxu0 0
      %697 = vmatprep.subr.bf16.mxu0 0
      %698 = vmatpush2.bf16.msra.mxu0 0
      %699 = vmatprep.subr.bf16.mxu0 0
      %700 = vmatpush2.bf16.msra.mxu0 0
      %701 = vmatprep.subr.bf16.mxu0 0
      %702 = vmatpush2.bf16.msra.mxu0 0
      %703 = vmatprep.subr.bf16.mxu0 0
      %704 = vmatpush2.bf16.msra.mxu0 0
      %705 = vmatprep.subr.bf16.mxu0 0
      %706 = vmatpush2.bf16.msra.mxu0 0
      %707 = vmatprep.subr.bf16.mxu0 0
      %708 = vmatpush2.bf16.msra.mxu0 0
      %709 = vmatprep.mubr.bf16.mxu0 0
      %710 = vmatmul.mubr.bf16.gmra.mxu0 %v599
      %v711 = vpop.f32.mrf.mxu0
      %v712 = vadd.f32 %v628, %v711
      %v713 = vpop.f32.mrf.mxu0
      %v714 = vpop.f32.mrf.mxu0
      %v715 = vadd.f32 %v628, %v714
      %v716 = vpop.f32.mrf.mxu0
      %717 = vmatprep.mubr.bf16.mxu0 0
      %718 = vmatmul.mubr.bf16.gmra.mxu0 %v600
      %v719 = vpop.f32.mrf.mxu0
      %v720 = vadd.f32 %v628, %v719
      %v721 = vpop.f32.mrf.mxu0
      %v722 = vpop.f32.mrf.mxu0
      %v723 = vadd.f32 %v628, %v722
      %v724 = vpop.f32.mrf.mxu0
      %725 = vmatprep.mubr.bf16.mxu0 0
      %726 = vmatmul.mubr.bf16.gmra.mxu0 %v601
      %v727 = vpop.f32.mrf.mxu0
      %v728 = vadd.f32 %v628, %v727
      %v729 = vpop.f32.mrf.mxu0
      %v730 = vpop.f32.mrf.mxu0
      %v731 = vadd.f32 %v628, %v730
      %v732 = vpop.f32.mrf.mxu0
      %733 = vmatprep.mubr.bf16.mxu0 0
      %734 = vmatmul.mubr.bf16.gmra.mxu0 %v602
      %v735 = vpop.f32.mrf.mxu0
      %v736 = vadd.f32 %v628, %v735
      %v737 = vpop.f32.mrf.mxu0
      %v738 = vpop.f32.mrf.mxu0
      %v739 = vadd.f32 %v628, %v738
      %v740 = vpop.f32.mrf.mxu0
      %741 = vmatprep.mubr.bf16.mxu0 0
      %742 = vmatmul.mubr.bf16.gmra.mxu0 %v603
      %v743 = vpop.f32.mrf.mxu0
      %v744 = vadd.f32 %v628, %v743
      %v745 = vpop.f32.mrf.mxu0
      %v746 = vpop.f32.mrf.mxu0
      %v747 = vadd.f32 %v628, %v746
      %v748 = vpop.f32.mrf.mxu0
      %749 = vmatprep.mubr.bf16.mxu0 0
      %750 = vmatmul.mubr.bf16.gmra.mxu0 %v604
      %v751 = vpop.f32.mrf.mxu0
      %v752 = vadd.f32 %v628, %v751
      %v753 = vpop.f32.mrf.mxu0
      %v754 = vpop.f32.mrf.mxu0
      %v755 = vadd.f32 %v628, %v754
      %v756 = vpop.f32.mrf.mxu0
      %757 = vmatprep.mubr.bf16.mxu0 0
      %758 = vmatmul.mubr.bf16.gmra.mxu0 %v605
      %v759 = vpop.f32.mrf.mxu0
      %v760 = vadd.f32 %v628, %v759
      %v761 = vpop.f32.mrf.mxu0
      %v762 = vpop.f32.mrf.mxu0
      %v763 = vadd.f32 %v628, %v762
      %v764 = vpop.f32.mrf.mxu0
      %765 = vmatprep.mubr.bf16.mxu0 0
      %766 = vmatmul.mubr.bf16.gmra.mxu0 %v606
      %v767 = vpop.f32.mrf.mxu0
      %v768 = vadd.f32 %v628, %v767
      %v769 = vpop.f32.mrf.mxu0
      %v770 = vpop.f32.mrf.mxu0
      %v771 = vadd.f32 %v628, %v770
      %v772 = vpop.f32.mrf.mxu0
      %773 = vdwg.mxu0
      %v774 = vpack.c.bf16 %v715, %v712
      %v775 = vpack.c.bf16 %v723, %v720
      %v776 = vpack.c.bf16 %v731, %v728
      %v777 = vpack.c.bf16 %v739, %v736
      %v778 = vpack.c.bf16 %v747, %v744
      %v779 = vpack.c.bf16 %v755, %v752
      %v780 = vpack.c.bf16 %v763, %v760
      %v781 = vpack.c.bf16 %v771, %v768
      %v790 = vunpack.c.l.b16 %v774
      %v791 = vunpack.c.h.b16 %v774
      %v792 = vunpack.c.l.b16 %v775
      %v793 = vunpack.c.h.b16 %v775
      %v794 = vunpack.c.l.b16 %v776
      %v795 = vunpack.c.h.b16 %v776
      %v796 = vunpack.c.l.b16 %v777
      %v797 = vunpack.c.h.b16 %v777
      %v798 = vunpack.c.l.b16 %v778
      %v799 = vunpack.c.h.b16 %v778
      %v800 = vunpack.c.l.b16 %v779
      %v801 = vunpack.c.h.b16 %v779
      %v802 = vunpack.c.l.b16 %v780
      %v803 = vunpack.c.h.b16 %v780
      %v804 = vunpack.c.l.b16 %v781
      %v805 = vunpack.c.h.b16 %v781
      %v806 = vpack.c.b16 %v790, %v790
      %v807 = vpack.c.b16 %v791, %v791
      %v808 = vpack.c.b16 %v792, %v792
      %v809 = vpack.c.b16 %v793, %v793
      %v810 = vpack.c.b16 %v794, %v794
      %v811 = vpack.c.b16 %v795, %v795
      %v812 = vpack.c.b16 %v796, %v796
      %v813 = vpack.c.b16 %v797, %v797
      %v814 = vpack.c.b16 %v798, %v798
      %v815 = vpack.c.b16 %v799, %v799
      %v816 = vpack.c.b16 %v800, %v800
      %v817 = vpack.c.b16 %v801, %v801
      %v818 = vpack.c.b16 %v802, %v802
      %v819 = vpack.c.b16 %v803, %v803
      %v820 = vpack.c.b16 %v804, %v804
      %v821 = vpack.c.b16 %v805, %v805
      %838 = vst [vmem:[%s199] sm:$0xf] %v806
      %839 = vst [vmem:[%s199 + $0x4] sm:$0xf] %v807
      %840 = vst [vmem:[%s199 + $0x8] sm:$0xf] %v808
      %841 = vst [vmem:[%s199 + $0xc] sm:$0xf] %v809
      %842 = vst [vmem:[%s199 + $0x10] sm:$0xf] %v810
      %843 = vst [vmem:[%s199 + $0x14] sm:$0xf] %v811
      %844 = vst [vmem:[%s199 + $0x18] sm:$0xf] %v812
      %845 = vst [vmem:[%s199 + $0x1c] sm:$0xf] %v813
      %846 = vst [vmem:[%s199 + $0x20] sm:$0xf] %v814
      %847 = vst [vmem:[%s199 + $0x24] sm:$0xf] %v815
      %848 = vst [vmem:[%s199 + $0x28] sm:$0xf] %v816
      %849 = vst [vmem:[%s199 + $0x2c] sm:$0xf] %v817
      %850 = vst [vmem:[%s199 + $0x30] sm:$0xf] %v818
      %851 = vst [vmem:[%s199 + $0x34] sm:$0xf] %v819
      %852 = vst [vmem:[%s199 + $0x38] sm:$0xf] %v820
      %853 = vst [vmem:[%s199 + $0x3c] sm:$0xf] %v821
      %s854 = smul.u32 16, %s15
      %p855 = scmp.lt.s32.totalorder %s854, 31
      %s856 = scalar_select %p855, %s854, 31
      %s857 = smul.addr %s856, 4
      %s858 = scalar_lea.vmem %s4, %s857
      // Predicated region
      $region37: #{mlp_policy_forward.1} parent=35 // pred_check
        %p859 = pneg %p122
      $region38: #{mlp_policy_forward.1} parent=35 // pred_check_branch
        %861 = sbr.rel (%p859) target = $region40
      $region39: #{mlp_policy_forward.1} parent=35 // pred_region
        %s862 = smul.u32 16, %s15
      $region40: #{mlp_policy_forward.1} parent=35 // pred_fallthru
        _
    $region36: #{mlp_policy_forward.1} parent=5 // pred_fallthru
      _
    %p863 = scmp.le.s32.totalorder 2, %s10
    // Predicated region
    $region41: #{mlp_policy_forward.1} parent=5 // pred_check
      %p864 = pneg %p863
    $region42: #{mlp_policy_forward.1} parent=5 // pred_check_branch
      %866 = sbr.rel (%p864) target = $region44
    $region43: #{mlp_policy_forward.1} parent=5 // pred_region
      %s867 = ssub.s32 %s10, 2
      // Predicated region
      $region45: #{mlp_policy_forward.1} parent=43 // pred_check
        %p868 = pneg %p128
      $region46: #{mlp_policy_forward.1} parent=43 // pred_check_branch
        %870 = sbr.rel (%p868) target = $region48
      $region47: #{mlp_policy_forward.1} parent=43 // pred_region
        %s871 = smul.u32 16, %s16
        %p872 = scmp.lt.s32.totalorder %s871, 31
        %s873 = scalar_select %p872, %s871, 31
        %s874 = smul.addr %s873, 4
        %s875 = scalar_lea.vmem %s4, %s874
      $region48: #{mlp_policy_forward.1} parent=43 // pred_fallthru
        _
    $region44: #{mlp_policy_forward.1} parent=5 // pred_fallthru
      _
  $region6: #{mlp_policy_forward.1} parent=0 // loop_footer
    %s14 = sadd.s32 1, %s10
  $region7: #{mlp_policy_forward.1} parent=0 // loop_footer_branch
    %9 = sbr.rel target = $region3
  $region8: #{mlp_policy_forward.1} parent=0 // loop_exit
    _

</llo_original>
